<compile_context>
chip_gen: v7x
topology: tpu7x:2x2x1
jax: 0.10.0
libtpu: 0.0.40
codegen_flags: <defaults>
</compile_context>

<pallas_src>
import jax
import jax.numpy as jnp
from jax.experimental import pallas as pl
from jax.experimental.pallas import tpu as pltpu


def autoencoder_kernel(w_ref, b_ref, x_ref, o_ref):
    """Folded autoencoder forward on one lane-dense (2, TN) slab.

    w_ref: SMEM (2, 2)   W_comb = W_dec @ W_enc
    b_ref: SMEM (2,)     b_comb = W_dec @ b_enc + b_dec
    x_ref: VMEM (2, TN)  features on sublanes, batch on the 128-lane axis
    o_ref: VMEM (2, TN)  reconstruction (same layout)
    """
    x0 = x_ref[0:1, :]   # (1, TN) feature 0 over the batch lanes
    x1 = x_ref[1:2, :]   # (1, TN) feature 1 over the batch lanes
    # Pure VPU broadcast multiply-adds; SMEM scalar reads broadcast for free.
    o_ref[0:1, :] = w_ref[0, 0] * x0 + w_ref[0, 1] * x1 + b_ref[0]
    o_ref[1:2, :] = w_ref[1, 0] * x0 + w_ref[1, 1] * x1 + b_ref[1]


def autoencoder_forward(x, w_enc, b_enc, w_dec, b_dec, *, tn_max=4096):
    """x: (N, 2) f32. Returns (N, 2) f32 reconstruction (decoder(encoder(x)))."""
    N, D = x.shape
    assert D == 2
    f32 = jnp.float32

    # Fold the two affine maps (wrapper-side, negligible cost):
    #   recon = (x @ We^T + be) @ Wd^T + bd = x @ (Wd@We)^T + (Wd@be + bd)
    w_comb = (w_dec.astype(f32) @ w_enc.astype(f32))                       # (2, 2)
    b_comb = (w_dec.astype(f32) @ b_enc.astype(f32).reshape(1, 1)).reshape(2) \
             + b_dec.astype(f32)                                           # (2,)

    # Lane-dense layout: batch on the lane axis. Pad N to a multiple of the
    # block lane width (itself a multiple of 128).
    tn = min(tn_max, max(128, pl.cdiv(N, 128) * 128))
    n_pad = pl.cdiv(N, tn) * tn
    x_t = x.astype(f32).T                                                  # (2, N)
    if n_pad != N:
        x_t = jnp.pad(x_t, ((0, 0), (0, n_pad - N)))
    grid = (n_pad // tn,)

    smem = pl.BlockSpec(memory_space=pltpu.MemorySpace.SMEM)
    out_t = pl.pallas_call(
        autoencoder_kernel,
        out_shape=jax.ShapeDtypeStruct((2, n_pad), f32),
        grid=grid,
        in_specs=[
            smem,                                            # W_comb scalars
            smem,                                            # b_comb scalars
            pl.BlockSpec((2, tn), lambda i: (0, i)),         # x^T block
        ],
        out_specs=pl.BlockSpec((2, tn), lambda i: (0, i)),   # recon^T block
        compiler_params=pltpu.CompilerParams(
            dimension_semantics=("parallel",),
        ),
        cost_estimate=pl.CostEstimate(
            flops=8 * n_pad,               # 4 mul + 4 add per batch element
            transcendentals=0,
            bytes_accessed=2 * (2 * n_pad * 4) + 4 * 4 + 2 * 4,
        ),
    )(w_comb, b_comb, x_t)

    # Back to the PyTorch (N, 2) layout, dropping the lane padding.
    return out_t[:, :N].T.astype(x.dtype)


def init_params(key):
    """Deterministic init mimicking torch.nn.Linear default U[-1/sqrt(fan_in), +]."""
    k1, k2, k3, k4 = jax.random.split(key, 4)
    # encoder: Linear(2, 1)
    bound_e = 1.0 / jnp.sqrt(2.0)
    w_enc = jax.random.uniform(k1, (1, 2), jnp.float32, -bound_e, bound_e)
    b_enc = jax.random.uniform(k2, (1,), jnp.float32, -bound_e, bound_e)
    # decoder: Linear(1, 2)
    bound_d = 1.0
    w_dec = jax.random.uniform(k3, (2, 1), jnp.float32, -bound_d, bound_d)
    b_dec = jax.random.uniform(k4, (2,), jnp.float32, -bound_d, bound_d)
    return w_enc, b_enc, w_dec, b_dec


if __name__ == "__main__":
    key = jax.random.PRNGKey(0)
    k_x, k_p = jax.random.split(key)

    # Match the script's data shape: x = torch.rand(100, D) with D = 2
    N, D = 100, 2
    x = jax.random.uniform(k_x, (N, D), jnp.float32)

    w_enc, b_enc, w_dec, b_dec = init_params(k_p)

    out = autoencoder_forward(x, w_enc, b_enc, w_dec, b_dec)
    out = jax.block_until_ready(out)

    # Pure-JAX reference check (unfolded, matches the PyTorch forward exactly).
    z_ref = x @ w_enc.T + b_enc
    ref = z_ref @ w_dec.T + b_dec
    assert out.shape == (N, D)
    assert jnp.allclose(out, ref, atol=1e-5, rtol=1e-5), "mismatch vs reference"

    print("KERNEL_OK")
</pallas_src>

<mosaic_0001>
module attributes {stable_mosaic.version = 11 : i64} {
  func.func @autoencoder_kernel(%arg0: i32, %arg1: memref<2x2xf32, #tpu.memory_space<smem>>, %arg2: memref<2xf32, #tpu.memory_space<smem>>, %arg3: memref<2x128xf32, #tpu.memory_space<vmem>>, %arg4: memref<2x128xf32, #tpu.memory_space<vmem>>) attributes {dimension_semantics = [#tpu.dimension_semantics<parallel>], iteration_bounds = array<i64: 1>, scalar_prefetch = 0 : i64, scratch_operands = 0 : i64, tpu.core_type = #tpu.core_type<tc>, window_params = [{transform_indices = @transform_0, window_bounds = array<i64: 2, 2>}, {transform_indices = @transform_1, window_bounds = array<i64: 2>}, {transform_indices = @transform_2, window_bounds = array<i64: 2, 128>}, {transform_indices = @transform_3, window_bounds = array<i64: 2, 128>}]} {
    %c0 = arith.constant 0 : index
    %c0_0 = arith.constant 0 : index
    %0 = vector.load %arg3[%c0, %c0_0] : memref<2x128xf32, #tpu.memory_space<vmem>>, vector<1x128xf32>
    %c1 = arith.constant 1 : index
    %c0_1 = arith.constant 0 : index
    %1 = vector.load %arg3[%c1, %c0_1] : memref<2x128xf32, #tpu.memory_space<vmem>>, vector<1x128xf32>
    %c0_2 = arith.constant 0 : index
    %c0_3 = arith.constant 0 : index
    %2 = memref.load %arg1[%c0_2, %c0_3] : memref<2x2xf32, #tpu.memory_space<smem>>
    %3 = vector.broadcast %2 : f32 to vector<1x128xf32>
    %4 = arith.mulf %3, %0 : vector<1x128xf32>
    %c0_4 = arith.constant 0 : index
    %c1_5 = arith.constant 1 : index
    %5 = memref.load %arg1[%c0_4, %c1_5] : memref<2x2xf32, #tpu.memory_space<smem>>
    %6 = vector.broadcast %5 : f32 to vector<1x128xf32>
    %7 = arith.mulf %6, %1 : vector<1x128xf32>
    %8 = arith.addf %4, %7 : vector<1x128xf32>
    %c0_6 = arith.constant 0 : index
    %9 = memref.load %arg2[%c0_6] : memref<2xf32, #tpu.memory_space<smem>>
    %10 = vector.broadcast %9 : f32 to vector<1x128xf32>
    %11 = arith.addf %8, %10 : vector<1x128xf32>
    %c0_7 = arith.constant 0 : index
    %c0_8 = arith.constant 0 : index
    %12 = vector.load %arg4[%c0_7, %c0_8] : memref<2x128xf32, #tpu.memory_space<vmem>>, vector<1x128xf32>
    tpu.vector_store %arg4[%c0_7, %c0_8], %11 {strides = array<i32>} : memref<2x128xf32, #tpu.memory_space<vmem>>, vector<1x128xf32>,
    %c1_9 = arith.constant 1 : index
    %c0_10 = arith.constant 0 : index
    %13 = memref.load %arg1[%c1_9, %c0_10] : memref<2x2xf32, #tpu.memory_space<smem>>
    %14 = vector.broadcast %13 : f32 to vector<1x128xf32>
    %15 = arith.mulf %14, %0 : vector<1x128xf32>
    %c1_11 = arith.constant 1 : index
    %c1_12 = arith.constant 1 : index
    %16 = memref.load %arg1[%c1_11, %c1_12] : memref<2x2xf32, #tpu.memory_space<smem>>
    %17 = vector.broadcast %16 : f32 to vector<1x128xf32>
    %18 = arith.mulf %17, %1 : vector<1x128xf32>
    %19 = arith.addf %15, %18 : vector<1x128xf32>
    %c1_13 = arith.constant 1 : index
    %20 = memref.load %arg2[%c1_13] : memref<2xf32, #tpu.memory_space<smem>>
    %21 = vector.broadcast %20 : f32 to vector<1x128xf32>
    %22 = arith.addf %19, %21 : vector<1x128xf32>
    %c1_14 = arith.constant 1 : index
    %c0_15 = arith.constant 0 : index
    %23 = vector.load %arg4[%c1_14, %c0_15] : memref<2x128xf32, #tpu.memory_space<vmem>>, vector<1x128xf32>
    tpu.vector_store %arg4[%c1_14, %c0_15], %22 {strides = array<i32>} : memref<2x128xf32, #tpu.memory_space<vmem>>, vector<1x128xf32>,
    return
  }
  func.func @transform_0(%arg0: i32) -> (i32, i32) {
    %c0_i32 = arith.constant 0 : i32
    %c0_i32_0 = arith.constant 0 : i32
    %c0_i32_1 = arith.constant 0 : i32
    return %c0_i32, %c0_i32_0 : i32, i32
  }
  func.func @transform_1(%arg0: i32) -> i32 {
    %c0_i32 = arith.constant 0 : i32
    %c0_i32_0 = arith.constant 0 : i32
    return %c0_i32 : i32
  }
  func.func @transform_2(%arg0: i32) -> (i32, i32) {
    %c0_i32 = arith.constant 0 : i32
    %c0_i32_0 = arith.constant 0 : i32
    return %c0_i32, %arg0 : i32, i32
  }
  func.func @transform_3(%arg0: i32) -> (i32, i32) {
    %c0_i32 = arith.constant 0 : i32
    %c0_i32_0 = arith.constant 0 : i32
    return %c0_i32, %arg0 : i32, i32
  }
}

</mosaic_0001>

<llo_original>
// kernel: tpu_custom_call.1
$region0: #{tpu_custom_call.1}
  #allocation0 [shape = 'u32[]', space=smem, size = 0x4, offset = 0x4, fixed_abs, tag = 'smem constant byte address 0x4 - core index']
  #allocation1 [shape = 'u32[144,128]{1,0:T(1,128)}', space=vmem, size = 0x12000, scoped, tag = 'internal scratch']
  %s0 = inlined_call_operand.hbm [shape: f32[2,2], index: 0, kind: input, shape index: {}]
  %s1 = inlined_call_operand.vmem [shape: f32[2], index: 1, kind: input, shape index: {}]
  %s2 = inlined_call_operand.vmem [shape: f32[2,128], index: 2, kind: input, shape index: {}]
  %s3 = inlined_call_operand.hbm [shape: f32[2,128], index: 3, kind: output, shape index: {}]
  %s4 = sld [smem:[#allocation0]]
  $region30: #{tpu_custom_call.1} parent=0
    _
  %s6 = ssub.s32 1, %s4
  %s7 = scalar_select 0, %s6, %s4
  $region1: #{tpu_custom_call.1} parent=0
    #allocation2 [shape = 'u8[1024]{0}', space=smem, size = 0x400, scoped, tag = 'input window, operand 0, single buffered']
    #allocation3 [shape = 's32[1]{0}', space=sflag, size = 0x4, scoped, tag = 'scoped memory for tpu_custom_call.1']
    #allocation4 [shape = 's32[1]{0}', space=sflag, size = 0x4, scoped, tag = 'scoped memory for tpu_custom_call.1']
    #allocation5 [shape = 's32[1]{0}', space=sflag, size = 0x4, scoped, tag = 'scoped memory for tpu_custom_call.1']
    #allocation6 [shape = 'u8[512]{0}', space=smem, size = 0x200, scoped, tag = 'input window, operand 1, single buffered']
    #allocation7 [shape = 'u8[1024]{0}', space=vmem, size = 0x400, scoped, tag = 'output window, operand 0, single buffered']
    %8 = vsyncpa [#allocation4], 0
    %9 = vsyncpa [#allocation5], 0
    %10 = vsyncpa [#allocation3], 0
    // Predicated region
    $region2: #{tpu_custom_call.1} parent=1 // pred_check
      _
    $region3: #{tpu_custom_call.1} parent=1 // pred_check_branch
      %12 = sbr.rel (0) target = $region5
    $region4: #{tpu_custom_call.1} parent=1 // pred_region
      %s14 = ssub.s32 32, 32
      %15 = vsyncadd [#allocation4], %s14
      %18 = dma.hbm_to_smem %s0, 32, [#allocation2], [#allocation4]
    $region5: #{tpu_custom_call.1} parent=1 // pred_fallthru
      _
    // Predicated region
    $region6: #{tpu_custom_call.1} parent=1 // pred_check
      _
    $region7: #{tpu_custom_call.1} parent=1 // pred_check_branch
      %20 = sbr.rel (0) target = $region9
    $region8: #{tpu_custom_call.1} parent=1 // pred_region
      %s22 = ssub.s32 16, 16
      %23 = vsyncadd [#allocation5], %s22
      %s25 = sshll.u32 %s1, 4
      %s26 = int_to_ptr.vmem [resolvable:$true] %s25
      %28 = dma.vmem_to_smem %s26, 16, [#allocation6], [#allocation5]
    $region9: #{tpu_custom_call.1} parent=1 // pred_fallthru
      _
    // Predicated region
    $region10: #{tpu_custom_call.1} parent=1 // pred_check
      _
    $region11: #{tpu_custom_call.1} parent=1 // pred_check_branch
      %30 = sbr.rel (0) target = $region13
    $region12: #{tpu_custom_call.1} parent=1 // pred_region
      _
    $region13: #{tpu_custom_call.1} parent=1 // pred_fallthru
      _
    // Predicated region
    $region14: #{tpu_custom_call.1} parent=1 // pred_check
      _
    $region15: #{tpu_custom_call.1} parent=1 // pred_check_branch
      %32 = sbr.rel (0) target = $region17
    $region16: #{tpu_custom_call.1} parent=1 // pred_region
      %33 = dma.done [#allocation4], 32
    $region17: #{tpu_custom_call.1} parent=1 // pred_fallthru
      _
    // Predicated region
    $region18: #{tpu_custom_call.1} parent=1 // pred_check
      _
    $region19: #{tpu_custom_call.1} parent=1 // pred_check_branch
      %35 = sbr.rel (0) target = $region21
    $region20: #{tpu_custom_call.1} parent=1 // pred_region
      %36 = dma.done [#allocation5], 16
    $region21: #{tpu_custom_call.1} parent=1 // pred_fallthru
      _
    %37 = sfence
    %v38 = vld [vmem:[%s2] sm:$0x1]
    %v39 = vld [vmem:[%s2 + $0x1] sm:$0x1]
    %s40 = sld [smem:[#allocation2]]
    %v41 = vstv %s40
    %v42 = vmul.f32 %v41, %v38
    %s43 = sld [smem:[#allocation2 + $0x1]]
    %v44 = vstv %s43
    %v45 = vmul.f32 %v44, %v39
    %v46 = vadd.f32 %v42, %v45
    %s47 = sld [smem:[#allocation6]]
    %v48 = vstv %s47
    %v49 = vadd.f32 %v46, %v48
    %50 = vst [vmem:[#allocation7] sm:$0x1] %v49
    %s51 = sld [smem:[#allocation2 + $0x80]]
    %v52 = vstv %s51
    %v53 = vmul.f32 %v52, %v38
    %s54 = sld [smem:[#allocation2 + $0x81]]
    %v55 = vstv %s54
    %v56 = vmul.f32 %v55, %v39
    %v57 = vadd.f32 %v53, %v56
    %s58 = sld [smem:[#allocation6 + $0x1]]
    %v59 = vstv %s58
    %v60 = vadd.f32 %v57, %v59
    %61 = vst [vmem:[#allocation7 + $0x1] sm:$0x1] %v60
    // Predicated region
    $region22: #{tpu_custom_call.1} parent=1 // pred_check
      _
    $region23: #{tpu_custom_call.1} parent=1 // pred_check_branch
      %63 = sbr.rel (0) target = $region25
    $region24: #{tpu_custom_call.1} parent=1 // pred_region
      %s65 = ssub.s32 32, 32
      %66 = vsyncadd [#allocation3], %s65
      %s68 = sshll.u32 [#allocation7], 4
      %s69 = int_to_ptr.vmem [resolvable:$true] %s68
      %71 = dma.vmem_to_hbm [thread:$0]  %s69, 32, %s3, [#allocation3]
    $region25: #{tpu_custom_call.1} parent=1 // pred_fallthru
      _
    // Predicated region
    $region26: #{tpu_custom_call.1} parent=1 // pred_check
      _
    $region27: #{tpu_custom_call.1} parent=1 // pred_check_branch
      %73 = sbr.rel (0) target = $region29
    $region28: #{tpu_custom_call.1} parent=1 // pred_region
      %74 = dma.done [#allocation3], 32
    $region29: #{tpu_custom_call.1} parent=1 // pred_fallthru
      _
    %75 = vsyncpa [#allocation3], 1
    %76 = vsyncpa [#allocation4], 1
    %77 = vsyncpa [#allocation5], 1

</llo_original>
